<compile_context>
chip_gen: v7x
topology: tpu7x:2x2x1
jax: 0.10.0
libtpu: 0.0.40
codegen_flags: <defaults>
</compile_context>

<pallas_src>
import functools

import jax
import jax.numpy as jnp
from jax.experimental import pallas as pl
from jax.experimental.pallas import tpu as pltpu


# Explicit scoped-VMEM budget: above the v5e 16 MiB default, comfortably under
# v7x's 64 MiB physical VMEM per TensorCore.
_VMEM_LIMIT = 48 * 1024 * 1024


def _round_up(x, m):
    return (x + m - 1) // m * m


def _pick_chunk(seq_len, max_chunk=8):
    """Largest chunk <= max_chunk that divides the sequence length."""
    for cand in (max_chunk, 4, 2, 1):
        if cand <= max_chunk and seq_len % cand == 0:
            return cand
    return 1


def _pick_batch_block(batch):
    """Split batch across TensorCores (v7x megacore) only when sublane-aligned."""
    if batch % 16 == 0:
        return batch // 2
    return batch


# -----------------------------------------------------------------------------
# Tiled Linear kernel: y = x @ w + b.  Grid over (row tiles, col tiles), both
# "parallel".  Used for (a) the hoisted layer-1 input-to-hidden matmul and
# (b) the final fully-connected layer.  Matmul operands in bf16, f32 accumulate.
# -----------------------------------------------------------------------------
def _linear_kernel(x_ref, w_ref, b_ref, o_ref):
    o_ref[...] = (jnp.dot(x_ref[...], w_ref[...],
                          preferred_element_type=jnp.float32)
                  + b_ref[...]).astype(o_ref.dtype)


def linear_tiled(x2d, w, b, *, compute_dtype=jnp.bfloat16,
                 block_n=256, block_o=512):
    """x2d: (N, K); w: (K, O); b: (1, O)  ->  (N, O) float32."""
    N, K = x2d.shape
    O = w.shape[1]

    bn = N if N <= block_n else block_n
    bo = O if O <= block_o else block_o
    Np = _round_up(N, bn)
    Op = _round_up(O, bo)

    xc = x2d.astype(compute_dtype)
    wc = w.astype(compute_dtype)
    bc = b.astype(jnp.float32)
    if Np != N:
        xc = jnp.pad(xc, ((0, Np - N), (0, 0)))
    if Op != O:
        wc = jnp.pad(wc, ((0, 0), (0, Op - O)))
        bc = jnp.pad(bc, ((0, 0), (0, Op - O)))

    out = pl.pallas_call(
        _linear_kernel,
        out_shape=jax.ShapeDtypeStruct((Np, Op), jnp.float32),
        grid_spec=pltpu.PrefetchScalarGridSpec(
            num_scalar_prefetch=0,
            grid=(Np // bn, Op // bo),
            in_specs=[
                pl.BlockSpec((bn, K), lambda i, j: (i, 0)),
                pl.BlockSpec((K, bo), lambda i, j: (0, j)),
                pl.BlockSpec((1, bo), lambda i, j: (0, j)),
            ],
            out_specs=pl.BlockSpec((bn, bo), lambda i, j: (i, j)),
        ),
        compiler_params=pltpu.CompilerParams(
            dimension_semantics=("parallel", "parallel"),
            vmem_limit_bytes=_VMEM_LIMIT),
    )(xc, wc, bc)
    if Np != N or Op != O:
        out = out[:N, :O]
    return out


# -----------------------------------------------------------------------------
# Fused 2-layer LSTM recurrence.  Grid = (batch blocks, sequence chunks).
# Per grid step: an unrolled loop over `chunk` time steps.  Layer 1's hoisted
# input projection (gates_x1) is streamed in per chunk; only the recurrent
# matmuls (h1@W_hh1, h1@W_ih2, h2@W_hh2) run inside the kernel.  h/c state for
# both layers lives in VMEM scratch across the sequence axis.
# -----------------------------------------------------------------------------
def _lstm2_kernel(gx1_ref, wih2_ref, whh1_ref, whh2_ref, b2_ref, h0_ref, c0_ref,
                  out_ref, hT_ref, cT_ref,
                  h1_scr, c1_scr, h2_scr, c2_scr,
                  *, hidden_size, chunk):
    H = hidden_size
    si = pl.program_id(1)

    @pl.when(si == 0)
    def _():
        h1_scr[...] = h0_ref[0]
        c1_scr[...] = c0_ref[0]
        h2_scr[...] = h0_ref[1]
        c2_scr[...] = c0_ref[1]

    cdt = whh1_ref.dtype  # matmul compute dtype (bf16)

    def _gates(pre, c_prev):
        # PyTorch gate order [i, f, g, o].
        # TODO(synk): for H not a multiple of 128 these lane slices are masked;
        # at the module's real H=1024 they are lane-aligned full-vreg ops.
        i_g = jax.nn.sigmoid(pre[:, 0 * H:1 * H])
        f_g = jax.nn.sigmoid(pre[:, 1 * H:2 * H])
        g_g = jnp.tanh(pre[:, 2 * H:3 * H])
        o_g = jax.nn.sigmoid(pre[:, 3 * H:4 * H])
        c_new = f_g * c_prev + i_g * g_g
        h_new = o_g * jnp.tanh(c_new)
        return h_new, c_new

    def step(t, carry):
        # Layer 1: x@W_ih1 + b1 was hoisted out of the recurrence (gx1_ref).
        g1 = gx1_ref[t] + jnp.dot(h1_scr[...].astype(cdt), whh1_ref[...],
                                  preferred_element_type=jnp.float32)
        h1_new, c1_new = _gates(g1, c1_scr[...])
        h1_scr[...] = h1_new
        c1_scr[...] = c1_new

        # Layer 2 (inter-layer dropout p=0.1 is inactive in eval mode).
        g2 = (jnp.dot(h1_new.astype(cdt), wih2_ref[...],
                      preferred_element_type=jnp.float32)
              + jnp.dot(h2_scr[...].astype(cdt), whh2_ref[...],
                        preferred_element_type=jnp.float32)
              + b2_ref[...])
        h2_new, c2_new = _gates(g2, c2_scr[...])
        h2_scr[...] = h2_new
        c2_scr[...] = c2_new
        out_ref[t] = h2_new
        return carry

    jax.lax.fori_loop(0, chunk, step, 0, unroll=True)

    # Final (h, c) for both layers, written once on the last sequence chunk.
    @pl.when(si == pl.num_programs(1) - 1)
    def _():
        hT_ref[0] = h1_scr[...]
        hT_ref[1] = h2_scr[...]
        cT_ref[0] = c1_scr[...]
        cT_ref[1] = c2_scr[...]


def lstm2_recurrent(gates_x1, wih2_t, whh1_t, whh2_t, b2, h0, c0,
                    *, chunk, batch_block):
    """gates_x1: (S, B, 4H) f32 precomputed layer-1 input gates (+bias).
       wih2_t/whh1_t/whh2_t: (H, 4H) bf16; b2: (1, 4H) f32; h0/c0: (2, B, H) f32.
       Returns layer-2 output (S, B, H) and final (h, c) each (2, B, H)."""
    S, B, G = gates_x1.shape
    H = h0.shape[-1]
    nb = B // batch_block
    ns = S // chunk

    kernel = functools.partial(_lstm2_kernel, hidden_size=H, chunk=chunk)

    out_tm, hT, cT = pl.pallas_call(
        kernel,
        out_shape=(
            jax.ShapeDtypeStruct((S, B, H), jnp.float32),
            jax.ShapeDtypeStruct((2, B, H), jnp.float32),
            jax.ShapeDtypeStruct((2, B, H), jnp.float32),
        ),
        grid_spec=pltpu.PrefetchScalarGridSpec(
            num_scalar_prefetch=0,
            grid=(nb, ns),
            in_specs=[
                # streamed per sequence chunk / batch block
                pl.BlockSpec((chunk, batch_block, G), lambda bi, si: (si, bi, 0)),
                # resident weights (constant block index; only fetched once)
                pl.BlockSpec((H, G), lambda bi, si: (0, 0)),   # W_ih2^T
                pl.BlockSpec((H, G), lambda bi, si: (0, 0)),   # W_hh1^T
                pl.BlockSpec((H, G), lambda bi, si: (0, 0)),   # W_hh2^T
                pl.BlockSpec((1, G), lambda bi, si: (0, 0)),   # bias layer 2
                pl.BlockSpec((2, batch_block, H), lambda bi, si: (0, bi, 0)),  # h0
                pl.BlockSpec((2, batch_block, H), lambda bi, si: (0, bi, 0)),  # c0
            ],
            out_specs=[
                pl.BlockSpec((chunk, batch_block, H), lambda bi, si: (si, bi, 0)),
                pl.BlockSpec((2, batch_block, H), lambda bi, si: (0, bi, 0)),
                pl.BlockSpec((2, batch_block, H), lambda bi, si: (0, bi, 0)),
            ],
            scratch_shapes=[
                pltpu.VMEM((batch_block, H), jnp.float32),   # h1
                pltpu.VMEM((batch_block, H), jnp.float32),   # c1
                pltpu.VMEM((batch_block, H), jnp.float32),   # h2
                pltpu.VMEM((batch_block, H), jnp.float32),   # c2
            ],
        ),
        compiler_params=pltpu.CompilerParams(
            # batch blocks are independent -> parallel (megacore on v7x);
            # sequence axis carries the recurrence -> arbitrary (sequential).
            dimension_semantics=("parallel", "arbitrary"),
            vmem_limit_bytes=_VMEM_LIMIT),
    )(gates_x1, wih2_t, whh1_t, whh2_t, b2, h0, c0)
    return out_tm, hT, cT


# -----------------------------------------------------------------------------
# Decoder forward (equivalent to the PyTorch module's forward, eval mode).
# -----------------------------------------------------------------------------
def decoder_forward(params, x, hidden, *, compute_dtype=jnp.bfloat16):
    """
    x:      (B, S, input_size) float32
    hidden: (h0, c0) each (num_layers=2, B, hidden_size)
    returns (prediction (B, S, output_size), (h_n, c_n))
    """
    h0_all, c0_all = hidden
    assert len(params["lstm"]) == 2, "fused kernel implements num_layers=2"
    (w_ih1, w_hh1, b_ih1, b_hh1), (w_ih2, w_hh2, b_ih2, b_hh2) = params["lstm"]
    w_fc, b_fc = params["fc"]

    B, S, D = x.shape
    H = w_hh1.shape[1]

    # --- hoisted layer-1 input projection: one big tiled MXU matmul ---
    x_tm = jnp.transpose(x, (1, 0, 2)).reshape(S * B, D)      # time-major rows
    b1 = (b_ih1 + b_hh1).reshape(1, 4 * H).astype(jnp.float32)
    gates_x1 = linear_tiled(x_tm, jnp.transpose(w_ih1), b1,
                            compute_dtype=compute_dtype)
    gates_x1 = gates_x1.reshape(S, B, 4 * H)

    # --- fused 2-layer recurrence (weights in bf16, state in f32) ---
    wih2_t = jnp.transpose(w_ih2).astype(compute_dtype)       # (H, 4H)
    whh1_t = jnp.transpose(w_hh1).astype(compute_dtype)       # (H, 4H)
    whh2_t = jnp.transpose(w_hh2).astype(compute_dtype)       # (H, 4H)
    b2 = (b_ih2 + b_hh2).reshape(1, 4 * H).astype(jnp.float32)

    chunk = _pick_chunk(S)
    batch_block = _pick_batch_block(B)
    out_tm, h_n, c_n = lstm2_recurrent(
        gates_x1, wih2_t, whh1_t, whh2_t, b2,
        h0_all.astype(jnp.float32), c0_all.astype(jnp.float32),
        chunk=chunk, batch_block=batch_block)

    # --- final Linear (tiled) ---
    pred2d = linear_tiled(out_tm.reshape(S * B, H), jnp.transpose(w_fc),
                          b_fc.reshape(1, -1).astype(jnp.float32),
                          compute_dtype=compute_dtype)
    pred = jnp.transpose(pred2d.reshape(S, B, -1), (1, 0, 2))  # (B, S, O)
    return pred, (h_n, c_n)


# -----------------------------------------------------------------------------
# Pure-JAX float32 reference (mirrors PyTorch LSTM semantics, eval mode).
# -----------------------------------------------------------------------------
def decoder_reference(params, x, hidden):
    h0_all, c0_all = hidden
    num_layers = len(params["lstm"])
    x_tm = jnp.transpose(x, (1, 0, 2))
    h_finals, c_finals = [], []
    layer_in = x_tm
    for l in range(num_layers):
        w_ih, w_hh, b_ih, b_hh = params["lstm"][l]
        H = w_hh.shape[1]

        def step(carry, x_t):
            h, c = carry
            gates = x_t @ w_ih.T + h @ w_hh.T + b_ih + b_hh
            i = jax.nn.sigmoid(gates[:, 0 * H:1 * H])
            f = jax.nn.sigmoid(gates[:, 1 * H:2 * H])
            g = jnp.tanh(gates[:, 2 * H:3 * H])
            o = jax.nn.sigmoid(gates[:, 3 * H:4 * H])
            c_new = f * c + i * g
            h_new = o * jnp.tanh(c_new)
            return (h_new, c_new), h_new

        (hT, cT), outs = jax.lax.scan(step, (h0_all[l], c0_all[l]), layer_in)
        layer_in = outs
        h_finals.append(hT)
        c_finals.append(cT)
    output = jnp.transpose(layer_in, (1, 0, 2))
    w_fc, b_fc = params["fc"]
    pred = output @ w_fc.T + b_fc
    return pred, (jnp.stack(h_finals, axis=0), jnp.stack(c_finals, axis=0))


def init_params(key, input_size, hidden_size, output_size, num_layers):
    """PyTorch-style uniform(-1/sqrt(H), 1/sqrt(H)) init, deterministic."""
    bound = 1.0 / jnp.sqrt(jnp.float32(hidden_size))
    lstm = []
    for l in range(num_layers):
        in_sz = input_size if l == 0 else hidden_size
        key, k1, k2, k3, k4 = jax.random.split(key, 5)
        w_ih = jax.random.uniform(k1, (4 * hidden_size, in_sz), jnp.float32, -bound, bound)
        w_hh = jax.random.uniform(k2, (4 * hidden_size, hidden_size), jnp.float32, -bound, bound)
        b_ih = jax.random.uniform(k3, (4 * hidden_size,), jnp.float32, -bound, bound)
        b_hh = jax.random.uniform(k4, (4 * hidden_size,), jnp.float32, -bound, bound)
        lstm.append((w_ih, w_hh, b_ih, b_hh))
    key, k5, k6 = jax.random.split(key, 3)
    w_fc = jax.random.uniform(k5, (output_size, hidden_size), jnp.float32, -bound, bound)
    b_fc = jax.random.uniform(k6, (output_size,), jnp.float32, -bound, bound)
    return {"lstm": lstm, "fc": (w_fc, b_fc)}


if __name__ == "__main__":
    # Small shapes consistent with the module (scaled down from 4096/1024).
    B, S = 2, 8
    input_size, hidden_size, output_size, num_layers = 32, 32, 32, 2

    key = jax.random.PRNGKey(0)
    key, kx, kh, kc = jax.random.split(key, 4)
    params = init_params(key, input_size, hidden_size, output_size, num_layers)

    x = jax.random.normal(kx, (B, S, input_size), jnp.float32)
    h0 = jax.random.normal(kh, (num_layers, B, hidden_size), jnp.float32)
    c0 = jax.random.normal(kc, (num_layers, B, hidden_size), jnp.float32)

    pred, (h_n, c_n) = decoder_forward(params, x, (h0, c0))
    jax.block_until_ready((pred, h_n, c_n))

    # Sanity check against pure-JAX f32 reference (kernel uses bf16 MXU
    # operands with f32 accumulation -> loose tolerance).
    pred_r, (h_r, c_r) = decoder_reference(params, x, (h0, c0))
    assert pred.shape == (B, S, output_size)
    assert h_n.shape == (num_layers, B, hidden_size)
    assert c_n.shape == (num_layers, B, hidden_size)
    assert jnp.allclose(pred, pred_r, atol=5e-2), "prediction mismatch"
    assert jnp.allclose(h_n, h_r, atol=5e-2), "hidden mismatch"
    assert jnp.allclose(c_n, c_r, atol=5e-2), "cell mismatch"

    print("KERNEL_OK")
</pallas_src>

<mosaic_0001>
module attributes {stable_mosaic.version = 11 : i64} {
  func.func @_linear_kernel(%arg0: i32, %arg1: i32, %arg2: memref<16x32xbf16, #tpu.memory_space<vmem>>, %arg3: memref<32x128xbf16, #tpu.memory_space<vmem>>, %arg4: memref<1x128xf32, #tpu.memory_space<vmem>>, %arg5: memref<16x128xf32, #tpu.memory_space<vmem>>) attributes {dimension_semantics = [#tpu.dimension_semantics<parallel>, #tpu.dimension_semantics<parallel>], iteration_bounds = array<i64: 1, 1>, scalar_prefetch = 0 : i64, scratch_operands = 0 : i64, tpu.core_type = #tpu.core_type<tc>, window_params = [{transform_indices = @transform_0, window_bounds = array<i64: 16, 32>}, {transform_indices = @transform_1, window_bounds = array<i64: 32, 128>}, {transform_indices = @transform_2, window_bounds = array<i64: 1, 128>}, {transform_indices = @transform_3, window_bounds = array<i64: 16, 128>}]} {
    %c0 = arith.constant 0 : index
    %c0_0 = arith.constant 0 : index
    %0 = vector.load %arg2[%c0, %c0_0] : memref<16x32xbf16, #tpu.memory_space<vmem>>, vector<16x32xbf16>
    %c0_1 = arith.constant 0 : index
    %c0_2 = arith.constant 0 : index
    %1 = vector.load %arg3[%c0_1, %c0_2] : memref<32x128xbf16, #tpu.memory_space<vmem>>, vector<32x128xbf16>
    %cst = arith.constant dense<0.000000e+00> : vector<16x128xf32>
    %2 = tpu.matmul %0, %1, %cst {dimension_numbers = #tpu.dot_dimension_numbers<[1], [0], [0], [1], [0, 0, 1, 1], [], []>} : vector<16x32xbf16>, vector<32x128xbf16>, vector<16x128xf32> -> vector<16x128xf32>
    %c0_3 = arith.constant 0 : index
    %c0_4 = arith.constant 0 : index
    %3 = vector.load %arg4[%c0_3, %c0_4] : memref<1x128xf32, #tpu.memory_space<vmem>>, vector<1x128xf32>
    %4 = vector.broadcast %3 : vector<1x128xf32> to vector<16x128xf32>
    %5 = arith.addf %2, %4 : vector<16x128xf32>
    %c0_5 = arith.constant 0 : index
    %c0_6 = arith.constant 0 : index
    %6 = vector.load %arg5[%c0_5, %c0_6] : memref<16x128xf32, #tpu.memory_space<vmem>>, vector<16x128xf32>
    tpu.vector_store %arg5[%c0_5, %c0_6], %5 {strides = array<i32>} : memref<16x128xf32, #tpu.memory_space<vmem>>, vector<16x128xf32>,
    return
  }
  func.func @transform_0(%arg0: i32, %arg1: i32) -> (i32, i32) {
    %c0_i32 = arith.constant 0 : i32
    %c0_i32_0 = arith.constant 0 : i32
    return %arg0, %c0_i32 : i32, i32
  }
  func.func @transform_1(%arg0: i32, %arg1: i32) -> (i32, i32) {
    %c0_i32 = arith.constant 0 : i32
    %c0_i32_0 = arith.constant 0 : i32
    return %c0_i32, %arg1 : i32, i32
  }
  func.func @transform_2(%arg0: i32, %arg1: i32) -> (i32, i32) {
    %c0_i32 = arith.constant 0 : i32
    %c0_i32_0 = arith.constant 0 : i32
    return %c0_i32, %arg1 : i32, i32
  }
  func.func @transform_3(%arg0: i32, %arg1: i32) -> (i32, i32) {
    %c0_i32 = arith.constant 0 : i32
    return %arg0, %arg1 : i32, i32
  }
}

</mosaic_0001>

<llo_original>
// kernel: tpu_custom_call.1
$region0: #{tpu_custom_call.1}
  #allocation0 [shape = 'u32[]', space=smem, size = 0x4, offset = 0x4, fixed_abs, tag = 'smem constant byte address 0x4 - core index']
  #allocation1 [shape = 'u32[144,128]{1,0:T(1,128)}', space=vmem, size = 0x12000, scoped, tag = 'internal scratch']
  %s0 = inlined_call_operand.hbm [shape: bf16[16,32], index: 0, kind: input, shape index: {}]
  %s1 = inlined_call_operand.hbm [shape: bf16[32,128], index: 1, kind: input, shape index: {}]
  %s2 = inlined_call_operand.vmem [shape: f32[1,128], index: 2, kind: input, shape index: {}]
  %s3 = inlined_call_operand.hbm [shape: f32[16,128], index: 3, kind: output, shape index: {}]
  %s4 = sld [smem:[#allocation0]]
  $region30: #{tpu_custom_call.1} parent=0
    _
  %s6 = ssub.s32 1, %s4
  %s7 = scalar_select 0, %s6, %s4
  $region1: #{tpu_custom_call.1} parent=0
    #allocation2 [shape = 'u8[4096]{0}', space=vmem, size = 0x1000, scoped, tag = 'input window, operand 0, single buffered']
    #allocation3 [shape = 's32[1]{0}', space=sflag, size = 0x4, scoped, tag = 'scoped memory for tpu_custom_call.1']
    #allocation4 [shape = 's32[1]{0}', space=sflag, size = 0x4, scoped, tag = 'scoped memory for tpu_custom_call.1']
    #allocation5 [shape = 'u8[8192]{0}', space=vmem, size = 0x2000, scoped, tag = 'input window, operand 1, single buffered']
    #allocation6 [shape = 's32[1]{0}', space=sflag, size = 0x4, scoped, tag = 'scoped memory for tpu_custom_call.1']
    #allocation7 [shape = 'u8[8192]{0}', space=vmem, size = 0x2000, scoped, tag = 'output window, operand 0, single buffered']
    %8 = vsyncpa [#allocation3], 0
    %9 = vsyncpa [#allocation6], 0
    %10 = vsyncpa [#allocation4], 0
    // Predicated region
    $region2: #{tpu_custom_call.1} parent=1 // pred_check
      _
    $region3: #{tpu_custom_call.1} parent=1 // pred_check_branch
      %12 = sbr.rel (0) target = $region5
    $region4: #{tpu_custom_call.1} parent=1 // pred_region
      %s14 = ssub.s32 128, 128
      %15 = vsyncadd [#allocation3], %s14
      %s16 = sshll.u32 [#allocation2], 4
      %s17 = int_to_ptr.vmem [resolvable:$true] %s16
      %22 = dma.hbm_to_vmem [thread:$0]  %s0, 128, %s17, [#allocation3], 64, 64, 4
    $region5: #{tpu_custom_call.1} parent=1 // pred_fallthru
      _
    // Predicated region
    $region6: #{tpu_custom_call.1} parent=1 // pred_check
      _
    $region7: #{tpu_custom_call.1} parent=1 // pred_check_branch
      %24 = sbr.rel (0) target = $region9
    $region8: #{tpu_custom_call.1} parent=1 // pred_region
      %s26 = ssub.s32 256, 256
      %27 = vsyncadd [#allocation6], %s26
      %s28 = sshll.u32 [#allocation5], 4
      %s29 = int_to_ptr.vmem [resolvable:$true] %s28
      %34 = dma.hbm_to_vmem [thread:$0]  %s1, 256, %s29, [#allocation6], 64, 64, 4
    $region9: #{tpu_custom_call.1} parent=1 // pred_fallthru
      _
    // Predicated region
    $region10: #{tpu_custom_call.1} parent=1 // pred_check
      _
    $region11: #{tpu_custom_call.1} parent=1 // pred_check_branch
      %36 = sbr.rel (0) target = $region13
    $region12: #{tpu_custom_call.1} parent=1 // pred_region
      _
    $region13: #{tpu_custom_call.1} parent=1 // pred_fallthru
      _
    // Predicated region
    $region14: #{tpu_custom_call.1} parent=1 // pred_check
      _
    $region15: #{tpu_custom_call.1} parent=1 // pred_check_branch
      %38 = sbr.rel (0) target = $region17
    $region16: #{tpu_custom_call.1} parent=1 // pred_region
      %39 = dma.done [#allocation3], 128
    $region17: #{tpu_custom_call.1} parent=1 // pred_fallthru
      _
    // Predicated region
    $region18: #{tpu_custom_call.1} parent=1 // pred_check
      _
    $region19: #{tpu_custom_call.1} parent=1 // pred_check_branch
      %41 = sbr.rel (0) target = $region21
    $region20: #{tpu_custom_call.1} parent=1 // pred_region
      %42 = dma.done [#allocation6], 256
    $region21: #{tpu_custom_call.1} parent=1 // pred_fallthru
      _
    %v44 = vld [vmem:[#allocation2] sm:$0xf]
    %v45 = vld [vmem:[#allocation2 + $0x4] sm:$0xf]
    %v46 = vld [vmem:[#allocation5] sm:$0xf]
    %v47 = vld [vmem:[#allocation5 + $0x4] sm:$0xf]
    %v48 = vld [vmem:[#allocation5 + $0x8] sm:$0xf]
    %v49 = vld [vmem:[#allocation5 + $0xc] sm:$0xf]
    %v50 = vld [vmem:[%s2] sm:$0x1]
    %v52 = vlaneseq
    %v53 = vshrl.u32 %v52, 7
    %v54 = vsub.s32 0, %v53
    %v55 = vrot.slane %v50, %v54
    %v59 = vunpack.c.l.b16 %v44
    %v60 = vunpack.c.l.b16 %v45
    %v61 = vpack.c.b16 %v60, %v59
    %v66 = vunpack.c.l.b16 %v46
    %v67 = vunpack.c.l.b16 %v47
    %v68 = vunpack.c.l.b16 %v48
    %v69 = vunpack.c.l.b16 %v49
    %v70 = vpack.c.b16 %v67, %v66
    %v71 = vpack.c.b16 %v69, %v68
    %vm74 = vcmask 261120
    %v76 = vsel %vm74, %v61, 0
    %78 = vmatprep.subr.bf16.mxu0 0
    %79 = vmatpush1.bf16.msra.mxu0 %v70
    %80 = vmatprep.subr.bf16.mxu0 0
    %81 = vmatpush1.bf16.msra.mxu0 %v71
    %82 = vmatprep.subr.bf16.mxu0 0
    %83 = vmatpush1.bf16.msra.mxu0 0
    %84 = vmatprep.subr.bf16.mxu0 0
    %85 = vmatpush1.bf16.msra.mxu0 0
    %86 = vmatprep.subr.bf16.mxu0 0
    %87 = vmatpush1.bf16.msra.mxu0 0
    %88 = vmatprep.subr.bf16.mxu0 0
    %89 = vmatpush1.bf16.msra.mxu0 0
    %90 = vmatprep.subr.bf16.mxu0 0
    %91 = vmatpush1.bf16.msra.mxu0 0
    %92 = vmatprep.subr.bf16.mxu0 0
    %93 = vmatpush1.bf16.msra.mxu0 0
    %94 = vmatprep.subr.bf16.mxu0 0
    %95 = vmatpush1.bf16.msra.mxu0 0
    %96 = vmatprep.subr.bf16.mxu0 0
    %97 = vmatpush1.bf16.msra.mxu0 0
    %98 = vmatprep.subr.bf16.mxu0 0
    %99 = vmatpush1.bf16.msra.mxu0 0
    %100 = vmatprep.subr.bf16.mxu0 0
    %101 = vmatpush1.bf16.msra.mxu0 0
    %102 = vmatprep.subr.bf16.mxu0 0
    %103 = vmatpush1.bf16.msra.mxu0 0
    %104 = vmatprep.subr.bf16.mxu0 0
    %105 = vmatpush1.bf16.msra.mxu0 0
    %106 = vmatprep.subr.bf16.mxu0 0
    %107 = vmatpush1.bf16.msra.mxu0 0
    %108 = vmatprep.subr.bf16.mxu0 0
    %109 = vmatpush1.bf16.msra.mxu0 0
    %110 = vmatprep.mubr.bf16.mxu0 0
    %111 = vmatmul.mubr.bf16.gmra.mrb[0].mxu0 %v76
    %v112 = vpop.f32.mrb[0].mxu0
    %v113 = vadd.f32 %v55, %v112
    %v114 = vpop.f32.mrb[0].mxu0
    %v115 = vpop.f32.mrb[0].mxu0
    %v116 = vadd.f32 %v55, %v115
    %v117 = vpop.f32.mrb[0].mxu0
    %118 = vdwg.mxu0
    %119 = vst [vmem:[#allocation7] sm:$0xff] %v113
    %120 = vst [vmem:[#allocation7 + $0x8] sm:$0xff] %v116
    // Predicated region
    $region22: #{tpu_custom_call.1} parent=1 // pred_check
      _
    $region23: #{tpu_custom_call.1} parent=1 // pred_check_branch
      %122 = sbr.rel (0) target = $region25
    $region24: #{tpu_custom_call.1} parent=1 // pred_region
      %s124 = ssub.s32 256, 256
      %125 = vsyncadd [#allocation4], %s124
      %s126 = sshll.u32 [#allocation7], 4
      %s127 = int_to_ptr.vmem [resolvable:$true] %s126
      %132 = dma.vmem_to_hbm [thread:$0]  %s127, 256, %s3, [#allocation4], 128, 128, 8
    $region25: #{tpu_custom_call.1} parent=1 // pred_fallthru
      _
    // Predicated region
    $region26: #{tpu_custom_call.1} parent=1 // pred_check
      _
    $region27: #{tpu_custom_call.1} parent=1 // pred_check_branch
      %134 = sbr.rel (0) target = $region29
    $region28: #{tpu_custom_call.1} parent=1 // pred_region
      %135 = dma.done [#allocation4], 256
    $region29: #{tpu_custom_call.1} parent=1 // pred_fallthru
      _
    %136 = vsyncpa [#allocation3], 1
    %137 = vsyncpa [#allocation6], 1
    %138 = vsyncpa [#allocation4], 1

</llo_original>
